<compile_context>
chip_gen: v7x
topology: tpu7x:2x2x1
jax: 0.10.0
libtpu: 0.0.40
codegen_flags: <defaults>
</compile_context>

<pallas_src>
import jax
import jax.numpy as jnp
from jax.experimental import pallas as pl
from jax.experimental.pallas import tpu as pltpu


def _round_up(x, m):
    return (x + m - 1) // m * m


# ----------------------------------------------------------------------------
# Pallas kernel: fused (folded) conv, one batch element per grid step
# ----------------------------------------------------------------------------
def _make_kernel(k, W, L_out):
    """Builds the kernel with static geometry (k, row stride W, output lanes)."""

    def kernel(x_ref, w_ref, o_ref):
        # x_ref : (1, C_in, L_in)      spatial flattened row-major (row stride W),
        #                              zero tail so tap slices stay in bounds.
        # w_ref : (k*k, C_out, C_in)   folded effective weights, one (C_out, C_in)
        #                              matrix per tap t = (dy, dx) = divmod(t, k).
        # o_ref : (1, C_out, L_out)    flattened output (junk sliced off in glue).
        x = x_ref[0]                                           # (C_in, L_in)

        # Tap 0 (dy=0, dx=0): channel contraction on the MXU, f32 accumulator.
        acc = jnp.dot(w_ref[0], x[:, 0:L_out],
                      preferred_element_type=jnp.float32)      # (C_out, L_out)
        # Remaining taps: static lane-offset slices feeding further MXU dots.
        for t in range(1, k * k):
            dy, dx = divmod(t, k)
            s = dy * W + dx                                    # static flat offset
            acc = acc + jnp.dot(w_ref[t], x[:, s:s + L_out],
                                preferred_element_type=jnp.float32)

        o_ref[0] = acc.astype(o_ref.dtype)

    return kernel


# ----------------------------------------------------------------------------
# Wrapper: weight folding + layout plumbing (flatten, pad) + pallas_call
# ----------------------------------------------------------------------------
def separable_conv2d_pointwise(x, w_depth, w_point):
    """x: (B, C_in, H, W); w_depth: (C_mid, 1, k, k); w_point: (C_out, C_mid, 1, 1)."""
    B, C_in, H, W = x.shape
    C_mid, wc_in, k, k2 = w_depth.shape
    assert wc_in == 1 and k == k2, "depthwise weight must be (C_mid, 1, k, k)"
    C_out = w_point.shape[0]
    assert w_point.shape[1] == C_mid and C_mid % C_in == 0
    dm = C_mid // C_in                              # depthwise channel multiplier
    H_out, W_out = H - k + 1, W - k + 1

    # Flattened-spatial, lane-dense geometry.  Taps of valid outputs never cross
    # a row boundary because j + dx <= W_out - 1 + (k - 1) = W - 1 < W, and never
    # read past H*W, so the zero tail is only there to keep slices in bounds.
    L_out = _round_up(H * W, 128)                   # output lanes per (b, channel)
    s_max = (k - 1) * W + (k - 1)                   # largest flat tap offset
    L_in = _round_up(L_out + s_max, 128)            # input lanes incl. zero tail

    # Fold depthwise (grouped: mid channel m = c*dm + d reads input channel c)
    # and pointwise (1x1) weights into one effective conv weight per tap.
    wd = w_depth.astype(jnp.float32).reshape(C_in, dm, k * k)
    wp = w_point.astype(jnp.float32).reshape(C_out, C_in, dm)
    w_eff = jnp.einsum("ocd,cdt->toc", wp, wd,
                       precision=jax.lax.Precision.HIGHEST)     # (k*k, C_out, C_in)

    # Glue: flatten spatial and zero-pad the lane tail (no channel replication).
    x_flat = x.astype(jnp.float32).reshape(B, C_in, H * W)
    x_flat = jnp.pad(x_flat, ((0, 0), (0, 0), (0, L_in - H * W)))  # (B, C_in, L_in)

    flops = 2 * B * C_out * C_in * (k * k) * L_out
    bytes_accessed = (x_flat.size + w_eff.size + B * C_out * L_out) * 4

    out_flat = pl.pallas_call(
        _make_kernel(k, W, L_out),
        out_shape=jax.ShapeDtypeStruct((B, C_out, L_out), jnp.float32),
        grid_spec=pltpu.PrefetchScalarGridSpec(
            num_scalar_prefetch=0,
            grid=(B,),
            in_specs=[
                pl.BlockSpec((1, C_in, L_in), lambda b: (b, 0, 0)),
                pl.BlockSpec((k * k, C_out, C_in), lambda b: (0, 0, 0)),  # resident
            ],
            out_specs=pl.BlockSpec((1, C_out, L_out), lambda b: (b, 0, 0)),
        ),
        compiler_params=pltpu.CompilerParams(
            dimension_semantics=("parallel",),      # megacore-shardable on v7x
        ),
        cost_estimate=pl.CostEstimate(
            flops=flops, transcendentals=0, bytes_accessed=bytes_accessed),
    )(x_flat, w_eff)

    # Un-flatten and drop the junk columns/rows introduced by the padded layout.
    out = out_flat[:, :, :H * W].reshape(B, C_out, H, W)[:, :, :H_out, :W_out]
    return out


# ----------------------------------------------------------------------------
# Plain-JAX reference (exact two-stage depthwise -> pointwise, f32, HIGHEST)
# ----------------------------------------------------------------------------
def separable_conv2d_pointwise_reference(x, w_depth, w_point):
    B, C_in, H, W = x.shape
    C_mid, _, k, _ = w_depth.shape
    C_out = w_point.shape[0]
    dm = C_mid // C_in
    H_out, W_out = H - k + 1, W - k + 1
    hi = jax.lax.Precision.HIGHEST
    # Grouped conv (groups=C_in): mid channel m convolves input channel m // dm.
    xg = jnp.repeat(x.astype(jnp.float32), dm, axis=1)              # (B, C_mid, H, W)
    patches = jnp.stack(
        [xg[:, :, dy:dy + H_out, dx:dx + W_out] for dy in range(k) for dx in range(k)],
        axis=-1)                                                    # (B, C_mid, Ho, Wo, k*k)
    inter = jnp.einsum("bmhwt,mt->bmhw", patches,
                       w_depth.reshape(C_mid, k * k).astype(jnp.float32), precision=hi)
    out = jnp.einsum("bmhw,om->bohw", inter,
                     w_point.reshape(C_out, C_mid).astype(jnp.float32), precision=hi)
    return out


if __name__ == "__main__":
    # SeparableConv2d_pointwise(in_channels=4, out_channels=8, depth=2,
    #                           kernel_size=3, bias=False)
    B, C_in, H, W = 2, 4, 16, 16
    C_out, depth, k = 8, 2, 3
    C_mid = C_out * depth                 # 16 mid channels, groups = C_in = 4

    key = jax.random.PRNGKey(0)
    k_x, k_wd, k_wp = jax.random.split(key, 3)
    x = jax.random.normal(k_x, (B, C_in, H, W), dtype=jnp.float32)
    # PyTorch weight layouts: depthwise (C_mid, C_in/groups=1, k, k), pointwise (C_out, C_mid, 1, 1)
    w_depth = jax.random.normal(k_wd, (C_mid, 1, k, k), dtype=jnp.float32) / (k * k)
    w_point = jax.random.normal(k_wp, (C_out, C_mid, 1, 1), dtype=jnp.float32) / C_mid

    out = separable_conv2d_pointwise(x, w_depth, w_point)
    out = jax.block_until_ready(out)

    ref = separable_conv2d_pointwise_reference(x, w_depth, w_point)
    assert out.shape == (B, C_out, H - k + 1, W - k + 1), out.shape
    max_err = float(jnp.max(jnp.abs(out - ref)))
    assert jnp.allclose(out, ref, rtol=1e-3, atol=1e-3), f"mismatch vs reference: {max_err}"

    print("KERNEL_OK")
</pallas_src>

<mosaic_0001>
module attributes {stable_mosaic.version = 11 : i64} {
  func.func @kernel(%arg0: i32, %arg1: memref<1x4x384xf32, #tpu.memory_space<vmem>>, %arg2: memref<9x8x4xf32, #tpu.memory_space<vmem>>, %arg3: memref<1x8x256xf32, #tpu.memory_space<vmem>>) attributes {dimension_semantics = [#tpu.dimension_semantics<parallel>], iteration_bounds = array<i64: 2>, scalar_prefetch = 0 : i64, scratch_operands = 0 : i64, tpu.core_type = #tpu.core_type<tc>, window_params = [{transform_indices = @transform_0, window_bounds = array<i64: 1, 4, 384>}, {pipeline_mode = #tpu.pipeline_mode<synchronous>, transform_indices = @transform_1, window_bounds = array<i64: 9, 8, 4>}, {transform_indices = @transform_2, window_bounds = array<i64: 1, 8, 256>}]} {
    %c0 = arith.constant 0 : index
    %c0_0 = arith.constant 0 : index
    %c0_1 = arith.constant 0 : index
    %0 = vector.load %arg1[%c0, %c0_0, %c0_1] : memref<1x4x384xf32, #tpu.memory_space<vmem>>, vector<1x4x384xf32>
    %1 = vector.shape_cast %0 : vector<1x4x384xf32> to vector<4x384xf32>
    %c0_2 = arith.constant 0 : index
    %c0_3 = arith.constant 0 : index
    %c0_4 = arith.constant 0 : index
    %2 = vector.load %arg2[%c0_2, %c0_3, %c0_4] : memref<9x8x4xf32, #tpu.memory_space<vmem>>, vector<1x8x4xf32>
    %3 = vector.shape_cast %2 : vector<1x8x4xf32> to vector<8x4xf32>
    %4 = vector.extract_strided_slice %1 {offsets = [0, 0], sizes = [4, 256], strides = [1, 1]} : vector<4x384xf32> to vector<4x256xf32>
    %cst = arith.constant dense<0.000000e+00> : vector<8x256xf32>
    %5 = tpu.matmul %3, %4, %cst {dimension_numbers = #tpu.dot_dimension_numbers<[1], [0], [0], [1], [0, 0, 1, 1], [], []>} : vector<8x4xf32>, vector<4x256xf32>, vector<8x256xf32> -> vector<8x256xf32>
    %c1 = arith.constant 1 : index
    %c0_5 = arith.constant 0 : index
    %c0_6 = arith.constant 0 : index
    %6 = vector.load %arg2[%c1, %c0_5, %c0_6] : memref<9x8x4xf32, #tpu.memory_space<vmem>>, vector<1x8x4xf32>
    %7 = vector.shape_cast %6 : vector<1x8x4xf32> to vector<8x4xf32>
    %8 = vector.extract_strided_slice %1 {offsets = [0, 1], sizes = [4, 256], strides = [1, 1]} : vector<4x384xf32> to vector<4x256xf32>
    %cst_7 = arith.constant dense<0.000000e+00> : vector<8x256xf32>
    %9 = tpu.matmul %7, %8, %cst_7 {dimension_numbers = #tpu.dot_dimension_numbers<[1], [0], [0], [1], [0, 0, 1, 1], [], []>} : vector<8x4xf32>, vector<4x256xf32>, vector<8x256xf32> -> vector<8x256xf32>
    %10 = arith.addf %5, %9 : vector<8x256xf32>
    %c2 = arith.constant 2 : index
    %c0_8 = arith.constant 0 : index
    %c0_9 = arith.constant 0 : index
    %11 = vector.load %arg2[%c2, %c0_8, %c0_9] : memref<9x8x4xf32, #tpu.memory_space<vmem>>, vector<1x8x4xf32>
    %12 = vector.shape_cast %11 : vector<1x8x4xf32> to vector<8x4xf32>
    %13 = vector.extract_strided_slice %1 {offsets = [0, 2], sizes = [4, 256], strides = [1, 1]} : vector<4x384xf32> to vector<4x256xf32>
    %cst_10 = arith.constant dense<0.000000e+00> : vector<8x256xf32>
    %14 = tpu.matmul %12, %13, %cst_10 {dimension_numbers = #tpu.dot_dimension_numbers<[1], [0], [0], [1], [0, 0, 1, 1], [], []>} : vector<8x4xf32>, vector<4x256xf32>, vector<8x256xf32> -> vector<8x256xf32>
    %15 = arith.addf %10, %14 : vector<8x256xf32>
    %c3 = arith.constant 3 : index
    %c0_11 = arith.constant 0 : index
    %c0_12 = arith.constant 0 : index
    %16 = vector.load %arg2[%c3, %c0_11, %c0_12] : memref<9x8x4xf32, #tpu.memory_space<vmem>>, vector<1x8x4xf32>
    %17 = vector.shape_cast %16 : vector<1x8x4xf32> to vector<8x4xf32>
    %18 = vector.extract_strided_slice %1 {offsets = [0, 16], sizes = [4, 256], strides = [1, 1]} : vector<4x384xf32> to vector<4x256xf32>
    %cst_13 = arith.constant dense<0.000000e+00> : vector<8x256xf32>
    %19 = tpu.matmul %17, %18, %cst_13 {dimension_numbers = #tpu.dot_dimension_numbers<[1], [0], [0], [1], [0, 0, 1, 1], [], []>} : vector<8x4xf32>, vector<4x256xf32>, vector<8x256xf32> -> vector<8x256xf32>
    %20 = arith.addf %15, %19 : vector<8x256xf32>
    %c4 = arith.constant 4 : index
    %c0_14 = arith.constant 0 : index
    %c0_15 = arith.constant 0 : index
    %21 = vector.load %arg2[%c4, %c0_14, %c0_15] : memref<9x8x4xf32, #tpu.memory_space<vmem>>, vector<1x8x4xf32>
    %22 = vector.shape_cast %21 : vector<1x8x4xf32> to vector<8x4xf32>
    %23 = vector.extract_strided_slice %1 {offsets = [0, 17], sizes = [4, 256], strides = [1, 1]} : vector<4x384xf32> to vector<4x256xf32>
    %cst_16 = arith.constant dense<0.000000e+00> : vector<8x256xf32>
    %24 = tpu.matmul %22, %23, %cst_16 {dimension_numbers = #tpu.dot_dimension_numbers<[1], [0], [0], [1], [0, 0, 1, 1], [], []>} : vector<8x4xf32>, vector<4x256xf32>, vector<8x256xf32> -> vector<8x256xf32>
    %25 = arith.addf %20, %24 : vector<8x256xf32>
    %c5 = arith.constant 5 : index
    %c0_17 = arith.constant 0 : index
    %c0_18 = arith.constant 0 : index
    %26 = vector.load %arg2[%c5, %c0_17, %c0_18] : memref<9x8x4xf32, #tpu.memory_space<vmem>>, vector<1x8x4xf32>
    %27 = vector.shape_cast %26 : vector<1x8x4xf32> to vector<8x4xf32>
    %28 = vector.extract_strided_slice %1 {offsets = [0, 18], sizes = [4, 256], strides = [1, 1]} : vector<4x384xf32> to vector<4x256xf32>
    %cst_19 = arith.constant dense<0.000000e+00> : vector<8x256xf32>
    %29 = tpu.matmul %27, %28, %cst_19 {dimension_numbers = #tpu.dot_dimension_numbers<[1], [0], [0], [1], [0, 0, 1, 1], [], []>} : vector<8x4xf32>, vector<4x256xf32>, vector<8x256xf32> -> vector<8x256xf32>
    %30 = arith.addf %25, %29 : vector<8x256xf32>
    %c6 = arith.constant 6 : index
    %c0_20 = arith.constant 0 : index
    %c0_21 = arith.constant 0 : index
    %31 = vector.load %arg2[%c6, %c0_20, %c0_21] : memref<9x8x4xf32, #tpu.memory_space<vmem>>, vector<1x8x4xf32>
    %32 = vector.shape_cast %31 : vector<1x8x4xf32> to vector<8x4xf32>
    %33 = vector.extract_strided_slice %1 {offsets = [0, 32], sizes = [4, 256], strides = [1, 1]} : vector<4x384xf32> to vector<4x256xf32>
    %cst_22 = arith.constant dense<0.000000e+00> : vector<8x256xf32>
    %34 = tpu.matmul %32, %33, %cst_22 {dimension_numbers = #tpu.dot_dimension_numbers<[1], [0], [0], [1], [0, 0, 1, 1], [], []>} : vector<8x4xf32>, vector<4x256xf32>, vector<8x256xf32> -> vector<8x256xf32>
    %35 = arith.addf %30, %34 : vector<8x256xf32>
    %c7 = arith.constant 7 : index
    %c0_23 = arith.constant 0 : index
    %c0_24 = arith.constant 0 : index
    %36 = vector.load %arg2[%c7, %c0_23, %c0_24] : memref<9x8x4xf32, #tpu.memory_space<vmem>>, vector<1x8x4xf32>
    %37 = vector.shape_cast %36 : vector<1x8x4xf32> to vector<8x4xf32>
    %38 = vector.extract_strided_slice %1 {offsets = [0, 33], sizes = [4, 256], strides = [1, 1]} : vector<4x384xf32> to vector<4x256xf32>
    %cst_25 = arith.constant dense<0.000000e+00> : vector<8x256xf32>
    %39 = tpu.matmul %37, %38, %cst_25 {dimension_numbers = #tpu.dot_dimension_numbers<[1], [0], [0], [1], [0, 0, 1, 1], [], []>} : vector<8x4xf32>, vector<4x256xf32>, vector<8x256xf32> -> vector<8x256xf32>
    %40 = arith.addf %35, %39 : vector<8x256xf32>
    %c8 = arith.constant 8 : index
    %c0_26 = arith.constant 0 : index
    %c0_27 = arith.constant 0 : index
    %41 = vector.load %arg2[%c8, %c0_26, %c0_27] : memref<9x8x4xf32, #tpu.memory_space<vmem>>, vector<1x8x4xf32>
    %42 = vector.shape_cast %41 : vector<1x8x4xf32> to vector<8x4xf32>
    %43 = vector.extract_strided_slice %1 {offsets = [0, 34], sizes = [4, 256], strides = [1, 1]} : vector<4x384xf32> to vector<4x256xf32>
    %cst_28 = arith.constant dense<0.000000e+00> : vector<8x256xf32>
    %44 = tpu.matmul %42, %43, %cst_28 {dimension_numbers = #tpu.dot_dimension_numbers<[1], [0], [0], [1], [0, 0, 1, 1], [], []>} : vector<8x4xf32>, vector<4x256xf32>, vector<8x256xf32> -> vector<8x256xf32>
    %45 = arith.addf %40, %44 : vector<8x256xf32>
    %c0_29 = arith.constant 0 : index
    %c0_30 = arith.constant 0 : index
    %c0_31 = arith.constant 0 : index
    %46 = vector.load %arg3[%c0_29, %c0_30, %c0_31] : memref<1x8x256xf32, #tpu.memory_space<vmem>>, vector<1x8x256xf32>
    %47 = vector.shape_cast %46 : vector<1x8x256xf32> to vector<8x256xf32>
    %48 = vector.shape_cast %45 : vector<8x256xf32> to vector<1x8x256xf32>
    tpu.vector_store %arg3[%c0_29, %c0_30, %c0_31], %48 {strides = array<i32>} : memref<1x8x256xf32, #tpu.memory_space<vmem>>, vector<1x8x256xf32>,
    return
  }
  func.func @transform_0(%arg0: i32) -> (i32, i32, i32) {
    %c0_i32 = arith.constant 0 : i32
    %c0_i32_0 = arith.constant 0 : i32
    %c0_i32_1 = arith.constant 0 : i32
    return %arg0, %c0_i32, %c0_i32_0 : i32, i32, i32
  }
  func.func @transform_1(%arg0: i32) -> (i32, i32, i32) {
    %c0_i32 = arith.constant 0 : i32
    %c0_i32_0 = arith.constant 0 : i32
    %c0_i32_1 = arith.constant 0 : i32
    %c0_i32_2 = arith.constant 0 : i32
    return %c0_i32, %c0_i32_0, %c0_i32_1 : i32, i32, i32
  }
  func.func @transform_2(%arg0: i32) -> (i32, i32, i32) {
    %c0_i32 = arith.constant 0 : i32
    %c0_i32_0 = arith.constant 0 : i32
    %c0_i32_1 = arith.constant 0 : i32
    return %arg0, %c0_i32, %c0_i32_0 : i32, i32, i32
  }
}

</mosaic_0001>

<llo_original>
// kernel: tpu_custom_call.1
$region0: #{tpu_custom_call.1}
  #allocation0 [shape = 'u32[]', space=smem, size = 0x4, offset = 0x4, fixed_abs, tag = 'smem constant byte address 0x4 - core index']
  #allocation1 [shape = 'u32[144,128]{1,0:T(1,128)}', space=vmem, size = 0x12000, scoped, tag = 'internal scratch']
  %s0 = inlined_call_operand.vmem [shape: f32[2,4,384], index: 0, kind: input, shape index: {}]
  %s1 = inlined_call_operand.vmem [shape: f32[9,8,4], index: 1, kind: input, shape index: {}]
  %s2 = inlined_call_operand.hbm [shape: f32[2,8,256], index: 2, kind: output, shape index: {}]
  %s3 = sld [smem:[#allocation0]]
  $region41: #{tpu_custom_call.1} parent=0
    _
  %s5 = ssub.s32 1, %s3
  %s6 = scalar_select 0, %s5, %s3
  $region1: #{tpu_custom_call.1} parent=0
    #allocation2 [shape = 'u8[16384]{0}', space=vmem, size = 0x4000, scoped, tag = 'output window, operand 0']
    #allocation3 [shape = 's32[2]{0}', space=sflag, size = 0x8, scoped, tag = 'scoped memory for tpu_custom_call.1']
    %7 = vsyncpa [#allocation3], 0
    %s8 = scalar_lea.sflag [#allocation3], 1
    %9 = vsyncpa %s8, 0
    loop: start=0, step=1, limit=4
    $region2: #{tpu_custom_call.1} parent=1 // loop_pre_header
      _
    $region3: #{tpu_custom_call.1} parent=1 // loop_header
      %s11 = sphi 0, %s15
      %p12 = scmp.ge.s32.totalorder %s11, 4
      %s21 = sphi 0, %s23
      %s24 = sphi 0, %s21
      %s25 = sphi 0, %s24
      %s41 = sphi 0, %s25
      %s45 = sphi 0, %s45
      %s47 = sphi 0, %s45
      %s48 = sphi 0, %s47
      %s62 = sphi 0, %s48
      %s68 = sphi 0, %s70
      %s71 = sphi 0, %s68
      %s72 = sphi 0, %s71
      %s88 = sphi 0, %s72
    $region4: #{tpu_custom_call.1} parent=1 // loop_header_branch
      %14 = sbr.rel (%p12) target = $region8
    $region5: #{tpu_custom_call.1} parent=1 // loop_body
      %s16 = ssub.s32 %s11, 1
      %s17 = ssub.s32 %s11, 2
      %s18 = sadd.s32 %s11, 1
      %s19 = ssub.s32 %s11, %s18
      %p20 = scmp.eq.s32.totalorder %s19, 0
      %s22 = sadd.s32 %s21, 1
      %s23 = scalar_select %p20, %s21, %s22
      %p26 = pneg %p20
      %p27 = scmp.eq.s32.totalorder %s11, 1
      %p28 = por %p26, %p27
      %p29 = scmp.ne.s32.totalorder %s21, %s24
      %p30 = scmp.eq.s32.totalorder %s11, 0
      %p31 = por %p29, %p30
      %p32 = scmp.ne.s32.totalorder %s21, %s24
      %p33 = scmp.eq.s32.totalorder %s16, 1
      %p34 = por %p32, %p33
      %p35 = scmp.ne.s32.totalorder %s24, %s25
      %p36 = scmp.eq.s32.totalorder %s16, 0
      %p37 = por %p35, %p36
      %p38 = scmp.ne.s32.totalorder %s24, %s25
      %p39 = scmp.eq.s32.totalorder %s17, 1
      %p40 = por %p38, %p39
      %p42 = scmp.ne.s32.totalorder %s25, %s41
      %p43 = scmp.eq.s32.totalorder %s17, 0
      %p44 = por %p42, %p43
      %s46 = sadd.s32 %s45, 1
      %p49 = scmp.eq.s32.totalorder %s11, 1
      %p50 = scmp.ne.s32.totalorder %s45, %s47
      %p51 = scmp.eq.s32.totalorder %s11, 0
      %p52 = por %p50, %p51
      %p53 = scmp.ne.s32.totalorder %s45, %s47
      %p54 = scmp.eq.s32.totalorder %s16, 1
      %p55 = por %p53, %p54
      %p56 = scmp.ne.s32.totalorder %s47, %s48
      %p57 = scmp.eq.s32.totalorder %s16, 0
      %p58 = por %p56, %p57
      %p59 = scmp.ne.s32.totalorder %s47, %s48
      %p60 = scmp.eq.s32.totalorder %s17, 1
      %p61 = por %p59, %p60
      %p63 = scmp.ne.s32.totalorder %s48, %s62
      %p64 = scmp.eq.s32.totalorder %s17, 0
      %p65 = por %p63, %p64
      %s66 = ssub.s32 %s11, %s18
      %p67 = scmp.eq.s32.totalorder %s66, 0
      %s69 = sadd.s32 %s68, 1
      %s70 = scalar_select %p67, %s68, %s69
      %p73 = pneg %p67
      %p74 = scmp.eq.s32.totalorder %s11, 1
      %p75 = por %p73, %p74
      %p76 = scmp.ne.s32.totalorder %s68, %s71
      %p77 = scmp.eq.s32.totalorder %s11, 0
      %p78 = por %p76, %p77
      %p79 = scmp.ne.s32.totalorder %s68, %s71
      %p80 = scmp.eq.s32.totalorder %s16, 1
      %p81 = por %p79, %p80
      %p82 = scmp.ne.s32.totalorder %s71, %s72
      %p83 = scmp.eq.s32.totalorder %s16, 0
      %p84 = por %p82, %p83
      %p85 = scmp.ne.s32.totalorder %s71, %s72
      %p86 = scmp.eq.s32.totalorder %s17, 1
      %p87 = por %p85, %p86
      %p89 = scmp.ne.s32.totalorder %s72, %s88
      %p90 = scmp.eq.s32.totalorder %s17, 0
      %p91 = por %p89, %p90
      %p92 = scmp.le.s32.totalorder 1, %s11
      %p93 = scmp.lt.s32.totalorder %s11, 3
      %p94 = pnand %p92, %p93
      %p95 = pneg %p94
      // Predicated region
      $region9: #{tpu_custom_call.1} parent=5 // pred_check
        _
      $region10: #{tpu_custom_call.1} parent=5 // pred_check_branch
        %97 = sbr.rel (%p94) target = $region12
      $region11: #{tpu_custom_call.1} parent=5 // pred_region
        %s98 = ssub.s32 %s11, 1
        // Predicated region
        $region13: #{tpu_custom_call.1} parent=11 // pred_check
          %p99 = pneg %p58
        $region14: #{tpu_custom_call.1} parent=11 // pred_check_branch
          %101 = sbr.rel (%p99) target = $region16
        $region15: #{tpu_custom_call.1} parent=11 // pred_region
          _
        $region16: #{tpu_custom_call.1} parent=11 // pred_fallthru
          _
      $region12: #{tpu_custom_call.1} parent=5 // pred_fallthru
        _
      %p102 = scmp.lt.s32.totalorder %s11, 2
      // Predicated region
      $region17: #{tpu_custom_call.1} parent=5 // pred_check
        %p103 = pneg %p102
      $region18: #{tpu_custom_call.1} parent=5 // pred_check_branch
        %105 = sbr.rel (%p103) target = $region20
      $region19: #{tpu_custom_call.1} parent=5 // pred_region
        // Predicated region
        $region21: #{tpu_custom_call.1} parent=19 // pred_check
          %p106 = pneg %p31
        $region22: #{tpu_custom_call.1} parent=19 // pred_check_branch
          %108 = sbr.rel (%p106) target = $region24
        $region23: #{tpu_custom_call.1} parent=19 // pred_region
          %p109 = scmp.lt.s32.totalorder %s11, 1
          %s110 = scalar_select %p109, %s11, 1
          %s111 = smul.addr %s110, 3
          %s112 = smul.addr %s111, 4
          %s113 = scalar_lea.vmem %s0, %s112
        $region24: #{tpu_custom_call.1} parent=19 // pred_fallthru
          _
      $region20: #{tpu_custom_call.1} parent=5 // pred_fallthru
        _
      %p114 = scmp.le.s32.totalorder 1, %s11
      %p115 = scmp.lt.s32.totalorder %s11, 3
      %p116 = pnand %p114, %p115
      %p117 = pneg %p116
      // Predicated region
      $region25: #{tpu_custom_call.1} parent=5 // pred_check
        _
      $region26: #{tpu_custom_call.1} parent=5 // pred_check_branch
        %119 = sbr.rel (%p116) target = $region28
      $region27: #{tpu_custom_call.1} parent=5 // pred_region
        %s120 = ssub.s32 %s11, 1
        %p121 = scmp.lt.s32.totalorder %s16, 1
        %s122 = scalar_select %p121, %s16, 1
        %s123 = smul.addr %s122, 3
        %s124 = smul.addr %s123, 4
        %s125 = scalar_lea.vmem %s0, %s124
        %p126 = pneg %p37
        %p127 = pneg %p34
        %p128 = pneg %p58
        %p129 = pneg %p55
        %p130 = pneg %p84
        %p131 = pneg %p81
        %s132 = sand.u32 %s71, 1
        %s133 = scalar_lea.sflag [#allocation3], %s132
        %s134 = sand.u32 %s71, 1
        %s135 = smul.addr %s134, 16
        %s136 = scalar_lea.vmem [#allocation2], %s135
        %p137 = scmp.lt.s32.totalorder %s16, 1
        %s138 = scalar_select %p137, %s16, 1
        %s139 = smul.addr %s138, 3
        %s140 = smul.addr %s139, 4
        %s141 = scalar_lea.vmem %s0, %s140
        %v142 = vld [vmem:[%s141] sm:$0xff]
        %v143 = vld [vmem:[%s141 + $0x8] sm:$0xf]
        %v144 = vld [vmem:[%s1] sm:$0xff]
        %s145 = scalar_lea.vmem %s1, 8
        %v146 = vld [vmem:[%s145] sm:$0xff]
        %v149 = vcombine.high %v142, %v142
        %150 = vrot.lane.b32.xlu0 %v142, 127
        %v151 = vpop.permute.xlu0 %150
        %152 = vrot.lane.b32.xlu0 %v149, 127
        %v153 = vpop.permute.xlu0 %152
        %154 = vrot.lane.b32.xlu0 %v143, 127
        %v155 = vpop.permute.xlu0 %154
        %vm156 = vcmask 1039360
        %v157 = vsel %vm156, %v151, %v153
        %v158 = vsel %vm156, %v153, %v155
        %vm159 = vcmask 31744
        %v161 = vsel %vm159, %v146, 0
        %vm163 = vcmask 1043456
        %v164 = vsel %vm163, %v157, 0
        %v166 = vsel %vm163, %v158, 0
        %168 = vmatprep.subr.mxu0 %v166
        %169 = vmatpush1.msra.mxu0 %v164
        %170 = vmatprep.subr.mxu0 0.0
        %171 = vmatpush1.msra.mxu0 0.0
        %172 = vmatprep.subr.mxu0 0.0
        %173 = vmatpush1.msra.mxu0 0.0
        %174 = vmatprep.subr.mxu0 0.0
        %175 = vmatpush1.msra.mxu0 0.0
        %176 = vmatprep.subr.mxu0 0.0
        %177 = vmatpush1.msra.mxu0 0.0
        %178 = vmatprep.subr.mxu0 0.0
        %179 = vmatpush1.msra.mxu0 0.0
        %180 = vmatprep.subr.mxu0 0.0
        %181 = vmatpush1.msra.mxu0 0.0
        %182 = vmatprep.subr.mxu0 0.0
        %183 = vmatpush1.msra.mxu0 0.0
        %184 = vmatprep.subr.mxu0 0.0
        %185 = vmatpush1.msra.mxu0 0.0
        %186 = vmatprep.subr.mxu0 0.0
        %187 = vmatpush1.msra.mxu0 0.0
        %188 = vmatprep.subr.mxu0 0.0
        %189 = vmatpush1.msra.mxu0 0.0
        %190 = vmatprep.subr.mxu0 0.0
        %191 = vmatpush1.msra.mxu0 0.0
        %192 = vmatprep.subr.mxu0 0.0
        %193 = vmatpush1.msra.mxu0 0.0
        %194 = vmatprep.subr.mxu0 0.0
        %195 = vmatpush1.msra.mxu0 0.0
        %196 = vmatprep.subr.mxu0 0.0
        %197 = vmatpush1.msra.mxu0 0.0
        %198 = vmatprep.subr.mxu0 0.0
        %199 = vmatpush1.msra.mxu0 0.0
        %200 = vmatprep.subr.mxu0 0.0
        %201 = vmatpush1.msra.mxu0 0.0
        %202 = vmatprep.subr.mxu0 0.0
        %203 = vmatpush1.msra.mxu0 0.0
        %204 = vmatprep.subr.mxu0 0.0
        %205 = vmatpush1.msra.mxu0 0.0
        %206 = vmatprep.subr.mxu0 0.0
        %207 = vmatpush1.msra.mxu0 0.0
        %208 = vmatprep.subr.mxu0 0.0
        %209 = vmatpush1.msra.mxu0 0.0
        %210 = vmatprep.subr.mxu0 0.0
        %211 = vmatpush1.msra.mxu0 0.0
        %212 = vmatprep.subr.mxu0 0.0
        %213 = vmatpush1.msra.mxu0 0.0
        %214 = vmatprep.subr.mxu0 0.0
        %215 = vmatpush1.msra.mxu0 0.0
        %216 = vmatprep.subr.mxu0 0.0
        %217 = vmatpush1.msra.mxu0 0.0
        %218 = vmatprep.subr.mxu0 0.0
        %219 = vmatpush1.msra.mxu0 0.0
        %220 = vmatprep.subr.mxu0 0.0
        %221 = vmatpush1.msra.mxu0 0.0
        %222 = vmatprep.subr.mxu0 0.0
        %223 = vmatpush1.msra.mxu0 0.0
        %224 = vmatprep.subr.mxu0 0.0
        %225 = vmatpush1.msra.mxu0 0.0
        %226 = vmatprep.subr.mxu0 0.0
        %227 = vmatpush1.msra.mxu0 0.0
        %228 = vmatprep.subr.mxu0 0.0
        %229 = vmatpush1.msra.mxu0 0.0
        %230 = vmatprep.subr.mxu0 0.0
        %231 = vmatpush1.msra.mxu0 0.0
        %232 = vmatprep.mubr.f32.mxu0 0.0
        %233 = vmatmul.mubr.f32.gmra.mrb[0].mxu0 %v161
        %v234 = vpop.f32.mrb[0].mxu0
        %v235 = vadd.f32 0.0, %v234
        %v236 = vpop.f32.mrb[0].mxu0
        %v237 = vadd.f32 0.0, %v236
        %238 = vdwg.mxu0
        %v240 = vsel %vm159, %v144, 0
        %v242 = vsel %vm163, %v142, 0
        %v244 = vsel %vm163, %v149, 0
        %246 = vmatprep.subr.mxu0 %v244
        %247 = vmatpush1.msra.mxu0 %v242
        %248 = vmatprep.subr.mxu0 0.0
        %249 = vmatpush1.msra.mxu0 0.0
        %250 = vmatprep.subr.mxu0 0.0
        %251 = vmatpush1.msra.mxu0 0.0
        %252 = vmatprep.subr.mxu0 0.0
        %253 = vmatpush1.msra.mxu0 0.0
        %254 = vmatprep.subr.mxu0 0.0
        %255 = vmatpush1.msra.mxu0 0.0
        %256 = vmatprep.subr.mxu0 0.0
        %257 = vmatpush1.msra.mxu0 0.0
        %258 = vmatprep.subr.mxu0 0.0
        %259 = vmatpush1.msra.mxu0 0.0
        %260 = vmatprep.subr.mxu0 0.0
        %261 = vmatpush1.msra.mxu0 0.0
        %262 = vmatprep.subr.mxu0 0.0
        %263 = vmatpush1.msra.mxu0 0.0
        %264 = vmatprep.subr.mxu0 0.0
        %265 = vmatpush1.msra.mxu0 0.0
        %266 = vmatprep.subr.mxu0 0.0
        %267 = vmatpush1.msra.mxu0 0.0
        %268 = vmatprep.subr.mxu0 0.0
        %269 = vmatpush1.msra.mxu0 0.0
        %270 = vmatprep.subr.mxu0 0.0
        %271 = vmatpush1.msra.mxu0 0.0
        %272 = vmatprep.subr.mxu0 0.0
        %273 = vmatpush1.msra.mxu0 0.0
        %274 = vmatprep.subr.mxu0 0.0
        %275 = vmatpush1.msra.mxu0 0.0
        %276 = vmatprep.subr.mxu0 0.0
        %277 = vmatpush1.msra.mxu0 0.0
        %278 = vmatprep.subr.mxu0 0.0
        %279 = vmatpush1.msra.mxu0 0.0
        %280 = vmatprep.subr.mxu0 0.0
        %281 = vmatpush1.msra.mxu0 0.0
        %282 = vmatprep.subr.mxu0 0.0
        %283 = vmatpush1.msra.mxu0 0.0
        %284 = vmatprep.subr.mxu0 0.0
        %285 = vmatpush1.msra.mxu0 0.0
        %286 = vmatprep.subr.mxu0 0.0
        %287 = vmatpush1.msra.mxu0 0.0
        %288 = vmatprep.subr.mxu0 0.0
        %289 = vmatpush1.msra.mxu0 0.0
        %290 = vmatprep.subr.mxu0 0.0
        %291 = vmatpush1.msra.mxu0 0.0
        %292 = vmatprep.subr.mxu0 0.0
        %293 = vmatpush1.msra.mxu0 0.0
        %294 = vmatprep.subr.mxu0 0.0
        %295 = vmatpush1.msra.mxu0 0.0
        %296 = vmatprep.subr.mxu0 0.0
        %297 = vmatpush1.msra.mxu0 0.0
        %298 = vmatprep.subr.mxu0 0.0
        %299 = vmatpush1.msra.mxu0 0.0
        %300 = vmatprep.subr.mxu0 0.0
        %301 = vmatpush1.msra.mxu0 0.0
        %302 = vmatprep.subr.mxu0 0.0
        %303 = vmatpush1.msra.mxu0 0.0
        %304 = vmatprep.subr.mxu0 0.0
        %305 = vmatpush1.msra.mxu0 0.0
        %306 = vmatprep.subr.mxu0 0.0
        %307 = vmatpush1.msra.mxu0 0.0
        %308 = vmatprep.subr.mxu0 0.0
        %309 = vmatpush1.msra.mxu0 0.0
        %310 = vmatprep.mubr.f32.mxu0 0.0
        %311 = vmatmul.mubr.f32.gmra.mrb[0].mxu0 %v240
        %v312 = vpop.f32.mrb[0].mxu0
        %v313 = vadd.f32 %v235, %v312
        %v314 = vpop.f32.mrb[0].mxu0
        %v315 = vadd.f32 %v237, %v314
        %316 = vdwg.mxu0
        %s317 = scalar_lea.vmem %s1, 16
        %v318 = vld [vmem:[%s317] sm:$0xff]
        %319 = vrot.lane.b32.xlu0 %v142, 126
        %v320 = vpop.permute.xlu0 %319
        %321 = vrot.lane.b32.xlu0 %v149, 126
        %v322 = vpop.permute.xlu0 %321
        %323 = vrot.lane.b32.xlu0 %v143, 126
        %v324 = vpop.permute.xlu0 %323
        %vm325 = vcmask 1031168
        %v326 = vsel %vm325, %v320, %v322
        %v327 = vsel %vm325, %v322, %v324
        %v329 = vsel %vm159, %v318, 0
        %v331 = vsel %vm163, %v326, 0
        %v333 = vsel %vm163, %v327, 0
        %335 = vmatprep.subr.mxu0 %v333
        %336 = vmatpush1.msra.mxu0 %v331
        %337 = vmatprep.subr.mxu0 0.0
        %338 = vmatpush1.msra.mxu0 0.0
        %339 = vmatprep.subr.mxu0 0.0
        %340 = vmatpush1.msra.mxu0 0.0
        %341 = vmatprep.subr.mxu0 0.0
        %342 = vmatpush1.msra.mxu0 0.0
        %343 = vmatprep.subr.mxu0 0.0
        %344 = vmatpush1.msra.mxu0 0.0
        %345 = vmatprep.subr.mxu0 0.0
        %346 = vmatpush1.msra.mxu0 0.0
        %347 = vmatprep.subr.mxu0 0.0
        %348 = vmatpush1.msra.mxu0 0.0
        %349 = vmatprep.subr.mxu0 0.0
        %350 = vmatpush1.msra.mxu0 0.0
        %351 = vmatprep.subr.mxu0 0.0
        %352 = vmatpush1.msra.mxu0 0.0
        %353 = vmatprep.subr.mxu0 0.0
        %354 = vmatpush1.msra.mxu0 0.0
        %355 = vmatprep.subr.mxu0 0.0
        %356 = vmatpush1.msra.mxu0 0.0
        %357 = vmatprep.subr.mxu0 0.0
        %358 = vmatpush1.msra.mxu0 0.0
        %359 = vmatprep.subr.mxu0 0.0
        %360 = vmatpush1.msra.mxu0 0.0
        %361 = vmatprep.subr.mxu0 0.0
        %362 = vmatpush1.msra.mxu0 0.0
        %363 = vmatprep.subr.mxu0 0.0
        %364 = vmatpush1.msra.mxu0 0.0
        %365 = vmatprep.subr.mxu0 0.0
        %366 = vmatpush1.msra.mxu0 0.0
        %367 = vmatprep.subr.mxu0 0.0
        %368 = vmatpush1.msra.mxu0 0.0
        %369 = vmatprep.subr.mxu0 0.0
        %370 = vmatpush1.msra.mxu0 0.0
        %371 = vmatprep.subr.mxu0 0.0
        %372 = vmatpush1.msra.mxu0 0.0
        %373 = vmatprep.subr.mxu0 0.0
        %374 = vmatpush1.msra.mxu0 0.0
        %375 = vmatprep.subr.mxu0 0.0
        %376 = vmatpush1.msra.mxu0 0.0
        %377 = vmatprep.subr.mxu0 0.0
        %378 = vmatpush1.msra.mxu0 0.0
        %379 = vmatprep.subr.mxu0 0.0
        %380 = vmatpush1.msra.mxu0 0.0
        %381 = vmatprep.subr.mxu0 0.0
        %382 = vmatpush1.msra.mxu0 0.0
        %383 = vmatprep.subr.mxu0 0.0
        %384 = vmatpush1.msra.mxu0 0.0
        %385 = vmatprep.subr.mxu0 0.0
        %386 = vmatpush1.msra.mxu0 0.0
        %387 = vmatprep.subr.mxu0 0.0
        %388 = vmatpush1.msra.mxu0 0.0
        %389 = vmatprep.subr.mxu0 0.0
        %390 = vmatpush1.msra.mxu0 0.0
        %391 = vmatprep.subr.mxu0 0.0
        %392 = vmatpush1.msra.mxu0 0.0
        %393 = vmatprep.subr.mxu0 0.0
        %394 = vmatpush1.msra.mxu0 0.0
        %395 = vmatprep.subr.mxu0 0.0
        %396 = vmatpush1.msra.mxu0 0.0
        %397 = vmatprep.subr.mxu0 0.0
        %398 = vmatpush1.msra.mxu0 0.0
        %399 = vmatprep.mubr.f32.mxu0 0.0
        %400 = vmatmul.mubr.f32.gmra.mrb[0].mxu0 %v329
        %v401 = vpop.f32.mrb[0].mxu0
        %v402 = vadd.f32 0.0, %v401
        %v403 = vpop.f32.mrb[0].mxu0
        %v404 = vadd.f32 0.0, %v403
        %405 = vdwg.mxu0
        %v406 = vadd.f32 %v313, %v402
        %v407 = vadd.f32 %v315, %v404
        %s408 = scalar_lea.vmem %s1, 24
        %v409 = vld [vmem:[%s408] sm:$0xff]
        %410 = vrot.lane.b32.xlu0 %v142, 112
        %v411 = vpop.permute.xlu0 %410
        %412 = vrot.lane.b32.xlu0 %v149, 112
        %v413 = vpop.permute.xlu0 %412
        %414 = vrot.lane.b32.xlu0 %v143, 112
        %v415 = vpop.permute.xlu0 %414
        %vm416 = vcmask 916480
        %v417 = vsel %vm416, %v411, %v413
        %v418 = vsel %vm416, %v413, %v415
        %v420 = vsel %vm159, %v409, 0
        %v422 = vsel %vm163, %v417, 0
        %v424 = vsel %vm163, %v418, 0
        %426 = vmatprep.subr.mxu0 %v424
        %427 = vmatpush1.msra.mxu0 %v422
        %428 = vmatprep.subr.mxu0 0.0
        %429 = vmatpush1.msra.mxu0 0.0
        %430 = vmatprep.subr.mxu0 0.0
        %431 = vmatpush1.msra.mxu0 0.0
        %432 = vmatprep.subr.mxu0 0.0
        %433 = vmatpush1.msra.mxu0 0.0
        %434 = vmatprep.subr.mxu0 0.0
        %435 = vmatpush1.msra.mxu0 0.0
        %436 = vmatprep.subr.mxu0 0.0
        %437 = vmatpush1.msra.mxu0 0.0
        %438 = vmatprep.subr.mxu0 0.0
        %439 = vmatpush1.msra.mxu0 0.0
        %440 = vmatprep.subr.mxu0 0.0
        %441 = vmatpush1.msra.mxu0 0.0
        %442 = vmatprep.subr.mxu0 0.0
        %443 = vmatpush1.msra.mxu0 0.0
        %444 = vmatprep.subr.mxu0 0.0
        %445 = vmatpush1.msra.mxu0 0.0
        %446 = vmatprep.subr.mxu0 0.0
        %447 = vmatpush1.msra.mxu0 0.0
        %448 = vmatprep.subr.mxu0 0.0
        %449 = vmatpush1.msra.mxu0 0.0
        %450 = vmatprep.subr.mxu0 0.0
        %451 = vmatpush1.msra.mxu0 0.0
        %452 = vmatprep.subr.mxu0 0.0
        %453 = vmatpush1.msra.mxu0 0.0
        %454 = vmatprep.subr.mxu0 0.0
        %455 = vmatpush1.msra.mxu0 0.0
        %456 = vmatprep.subr.mxu0 0.0
        %457 = vmatpush1.msra.mxu0 0.0
        %458 = vmatprep.subr.mxu0 0.0
        %459 = vmatpush1.msra.mxu0 0.0
        %460 = vmatprep.subr.mxu0 0.0
        %461 = vmatpush1.msra.mxu0 0.0
        %462 = vmatprep.subr.mxu0 0.0
        %463 = vmatpush1.msra.mxu0 0.0
        %464 = vmatprep.subr.mxu0 0.0
        %465 = vmatpush1.msra.mxu0 0.0
        %466 = vmatprep.subr.mxu0 0.0
        %467 = vmatpush1.msra.mxu0 0.0
        %468 = vmatprep.subr.mxu0 0.0
        %469 = vmatpush1.msra.mxu0 0.0
        %470 = vmatprep.subr.mxu0 0.0
        %471 = vmatpush1.msra.mxu0 0.0
        %472 = vmatprep.subr.mxu0 0.0
        %473 = vmatpush1.msra.mxu0 0.0
        %474 = vmatprep.subr.mxu0 0.0
        %475 = vmatpush1.msra.mxu0 0.0
        %476 = vmatprep.subr.mxu0 0.0
        %477 = vmatpush1.msra.mxu0 0.0
        %478 = vmatprep.subr.mxu0 0.0
        %479 = vmatpush1.msra.mxu0 0.0
        %480 = vmatprep.subr.mxu0 0.0
        %481 = vmatpush1.msra.mxu0 0.0
        %482 = vmatprep.subr.mxu0 0.0
        %483 = vmatpush1.msra.mxu0 0.0
        %484 = vmatprep.subr.mxu0 0.0
        %485 = vmatpush1.msra.mxu0 0.0
        %486 = vmatprep.subr.mxu0 0.0
        %487 = vmatpush1.msra.mxu0 0.0
        %488 = vmatprep.subr.mxu0 0.0
        %489 = vmatpush1.msra.mxu0 0.0
        %490 = vmatprep.mubr.f32.mxu0 0.0
        %491 = vmatmul.mubr.f32.gmra.mrb[0].mxu0 %v420
        %v492 = vpop.f32.mrb[0].mxu0
        %v493 = vadd.f32 0.0, %v492
        %v494 = vpop.f32.mrb[0].mxu0
        %v495 = vadd.f32 0.0, %v494
        %496 = vdwg.mxu0
        %v497 = vadd.f32 %v406, %v493
        %v498 = vadd.f32 %v407, %v495
        %s499 = scalar_lea.vmem %s1, 32
        %v500 = vld [vmem:[%s499] sm:$0xff]
        %501 = vrot.lane.b32.xlu0 %v142, 111
        %v502 = vpop.permute.xlu0 %501
        %503 = vrot.lane.b32.xlu0 %v149, 111
        %v504 = vpop.permute.xlu0 %503
        %505 = vrot.lane.b32.xlu0 %v143, 111
        %v506 = vpop.permute.xlu0 %505
        %vm507 = vcmask 908288
        %v508 = vsel %vm507, %v502, %v504
        %v509 = vsel %vm507, %v504, %v506
        %v511 = vsel %vm159, %v500, 0
        %v513 = vsel %vm163, %v508, 0
        %v515 = vsel %vm163, %v509, 0
        %517 = vmatprep.subr.mxu0 %v515
        %518 = vmatpush1.msra.mxu0 %v513
        %519 = vmatprep.subr.mxu0 0.0
        %520 = vmatpush1.msra.mxu0 0.0
        %521 = vmatprep.subr.mxu0 0.0
        %522 = vmatpush1.msra.mxu0 0.0
        %523 = vmatprep.subr.mxu0 0.0
        %524 = vmatpush1.msra.mxu0 0.0
        %525 = vmatprep.subr.mxu0 0.0
        %526 = vmatpush1.msra.mxu0 0.0
        %527 = vmatprep.subr.mxu0 0.0
        %528 = vmatpush1.msra.mxu0 0.0
        %529 = vmatprep.subr.mxu0 0.0
        %530 = vmatpush1.msra.mxu0 0.0
        %531 = vmatprep.subr.mxu0 0.0
        %532 = vmatpush1.msra.mxu0 0.0
        %533 = vmatprep.subr.mxu0 0.0
        %534 = vmatpush1.msra.mxu0 0.0
        %535 = vmatprep.subr.mxu0 0.0
        %536 = vmatpush1.msra.mxu0 0.0
        %537 = vmatprep.subr.mxu0 0.0
        %538 = vmatpush1.msra.mxu0 0.0
        %539 = vmatprep.subr.mxu0 0.0
        %540 = vmatpush1.msra.mxu0 0.0
        %541 = vmatprep.subr.mxu0 0.0
        %542 = vmatpush1.msra.mxu0 0.0
        %543 = vmatprep.subr.mxu0 0.0
        %544 = vmatpush1.msra.mxu0 0.0
        %545 = vmatprep.subr.mxu0 0.0
        %546 = vmatpush1.msra.mxu0 0.0
        %547 = vmatprep.subr.mxu0 0.0
        %548 = vmatpush1.msra.mxu0 0.0
        %549 = vmatprep.subr.mxu0 0.0
        %550 = vmatpush1.msra.mxu0 0.0
        %551 = vmatprep.subr.mxu0 0.0
        %552 = vmatpush1.msra.mxu0 0.0
        %553 = vmatprep.subr.mxu0 0.0
        %554 = vmatpush1.msra.mxu0 0.0
        %555 = vmatprep.subr.mxu0 0.0
        %556 = vmatpush1.msra.mxu0 0.0
        %557 = vmatprep.subr.mxu0 0.0
        %558 = vmatpush1.msra.mxu0 0.0
        %559 = vmatprep.subr.mxu0 0.0
        %560 = vmatpush1.msra.mxu0 0.0
        %561 = vmatprep.subr.mxu0 0.0
        %562 = vmatpush1.msra.mxu0 0.0
        %563 = vmatprep.subr.mxu0 0.0
        %564 = vmatpush1.msra.mxu0 0.0
        %565 = vmatprep.subr.mxu0 0.0
        %566 = vmatpush1.msra.mxu0 0.0
        %567 = vmatprep.subr.mxu0 0.0
        %568 = vmatpush1.msra.mxu0 0.0
        %569 = vmatprep.subr.mxu0 0.0
        %570 = vmatpush1.msra.mxu0 0.0
        %571 = vmatprep.subr.mxu0 0.0
        %572 = vmatpush1.msra.mxu0 0.0
        %573 = vmatprep.subr.mxu0 0.0
        %574 = vmatpush1.msra.mxu0 0.0
        %575 = vmatprep.subr.mxu0 0.0
        %576 = vmatpush1.msra.mxu0 0.0
        %577 = vmatprep.subr.mxu0 0.0
        %578 = vmatpush1.msra.mxu0 0.0
        %579 = vmatprep.subr.mxu0 0.0
        %580 = vmatpush1.msra.mxu0 0.0
        %581 = vmatprep.mubr.f32.mxu0 0.0
        %582 = vmatmul.mubr.f32.gmra.mrb[0].mxu0 %v511
        %v583 = vpop.f32.mrb[0].mxu0
        %v584 = vadd.f32 0.0, %v583
        %v585 = vpop.f32.mrb[0].mxu0
        %v586 = vadd.f32 0.0, %v585
        %587 = vdwg.mxu0
        %v588 = vadd.f32 %v497, %v584
        %v589 = vadd.f32 %v498, %v586
        %s590 = scalar_lea.vmem %s1, 40
        %v591 = vld [vmem:[%s590] sm:$0xff]
        %592 = vrot.lane.b32.xlu0 %v142, 110
        %v593 = vpop.permute.xlu0 %592
        %594 = vrot.lane.b32.xlu0 %v149, 110
        %v595 = vpop.permute.xlu0 %594
        %596 = vrot.lane.b32.xlu0 %v143, 110
        %v597 = vpop.permute.xlu0 %596
        %vm598 = vcmask 900096
        %v599 = vsel %vm598, %v593, %v595
        %v600 = vsel %vm598, %v595, %v597
        %v602 = vsel %vm159, %v591, 0
        %v604 = vsel %vm163, %v599, 0
        %v606 = vsel %vm163, %v600, 0
        %608 = vmatprep.subr.mxu0 %v606
        %609 = vmatpush1.msra.mxu0 %v604
        %610 = vmatprep.subr.mxu0 0.0
        %611 = vmatpush1.msra.mxu0 0.0
        %612 = vmatprep.subr.mxu0 0.0
        %613 = vmatpush1.msra.mxu0 0.0
        %614 = vmatprep.subr.mxu0 0.0
        %615 = vmatpush1.msra.mxu0 0.0
        %616 = vmatprep.subr.mxu0 0.0
        %617 = vmatpush1.msra.mxu0 0.0
        %618 = vmatprep.subr.mxu0 0.0
        %619 = vmatpush1.msra.mxu0 0.0
        %620 = vmatprep.subr.mxu0 0.0
        %621 = vmatpush1.msra.mxu0 0.0
        %622 = vmatprep.subr.mxu0 0.0
        %623 = vmatpush1.msra.mxu0 0.0
        %624 = vmatprep.subr.mxu0 0.0
        %625 = vmatpush1.msra.mxu0 0.0
        %626 = vmatprep.subr.mxu0 0.0
        %627 = vmatpush1.msra.mxu0 0.0
        %628 = vmatprep.subr.mxu0 0.0
        %629 = vmatpush1.msra.mxu0 0.0
        %630 = vmatprep.subr.mxu0 0.0
        %631 = vmatpush1.msra.mxu0 0.0
        %632 = vmatprep.subr.mxu0 0.0
        %633 = vmatpush1.msra.mxu0 0.0
        %634 = vmatprep.subr.mxu0 0.0
        %635 = vmatpush1.msra.mxu0 0.0
        %636 = vmatprep.subr.mxu0 0.0
        %637 = vmatpush1.msra.mxu0 0.0
        %638 = vmatprep.subr.mxu0 0.0
        %639 = vmatpush1.msra.mxu0 0.0
        %640 = vmatprep.subr.mxu0 0.0
        %641 = vmatpush1.msra.mxu0 0.0
        %642 = vmatprep.subr.mxu0 0.0
        %643 = vmatpush1.msra.mxu0 0.0
        %644 = vmatprep.subr.mxu0 0.0
        %645 = vmatpush1.msra.mxu0 0.0
        %646 = vmatprep.subr.mxu0 0.0
        %647 = vmatpush1.msra.mxu0 0.0
        %648 = vmatprep.subr.mxu0 0.0
        %649 = vmatpush1.msra.mxu0 0.0
        %650 = vmatprep.subr.mxu0 0.0
        %651 = vmatpush1.msra.mxu0 0.0
        %652 = vmatprep.subr.mxu0 0.0
        %653 = vmatpush1.msra.mxu0 0.0
        %654 = vmatprep.subr.mxu0 0.0
        %655 = vmatpush1.msra.mxu0 0.0
        %656 = vmatprep.subr.mxu0 0.0
        %657 = vmatpush1.msra.mxu0 0.0
        %658 = vmatprep.subr.mxu0 0.0
        %659 = vmatpush1.msra.mxu0 0.0
        %660 = vmatprep.subr.mxu0 0.0
        %661 = vmatpush1.msra.mxu0 0.0
        %662 = vmatprep.subr.mxu0 0.0
        %663 = vmatpush1.msra.mxu0 0.0
        %664 = vmatprep.subr.mxu0 0.0
        %665 = vmatpush1.msra.mxu0 0.0
        %666 = vmatprep.subr.mxu0 0.0
        %667 = vmatpush1.msra.mxu0 0.0
        %668 = vmatprep.subr.mxu0 0.0
        %669 = vmatpush1.msra.mxu0 0.0
        %670 = vmatprep.subr.mxu0 0.0
        %671 = vmatpush1.msra.mxu0 0.0
        %672 = vmatprep.mubr.f32.mxu0 0.0
        %673 = vmatmul.mubr.f32.gmra.mrb[0].mxu0 %v602
        %v674 = vpop.f32.mrb[0].mxu0
        %v675 = vadd.f32 0.0, %v674
        %v676 = vpop.f32.mrb[0].mxu0
        %v677 = vadd.f32 0.0, %v676
        %678 = vdwg.mxu0
        %v679 = vadd.f32 %v588, %v675
        %v680 = vadd.f32 %v589, %v677
        %s681 = scalar_lea.vmem %s1, 48
        %v682 = vld [vmem:[%s681] sm:$0xff]
        %683 = vrot.lane.b32.xlu0 %v142, 96
        %v684 = vpop.permute.xlu0 %683
        %685 = vrot.lane.b32.xlu0 %v149, 96
        %v686 = vpop.permute.xlu0 %685
        %687 = vrot.lane.b32.xlu0 %v143, 96
        %v688 = vpop.permute.xlu0 %687
        %vm689 = vcmask 785408
        %v690 = vsel %vm689, %v684, %v686
        %v691 = vsel %vm689, %v686, %v688
        %v693 = vsel %vm159, %v682, 0
        %v695 = vsel %vm163, %v690, 0
        %v697 = vsel %vm163, %v691, 0
        %699 = vmatprep.subr.mxu0 %v697
        %700 = vmatpush1.msra.mxu0 %v695
        %701 = vmatprep.subr.mxu0 0.0
        %702 = vmatpush1.msra.mxu0 0.0
        %703 = vmatprep.subr.mxu0 0.0
        %704 = vmatpush1.msra.mxu0 0.0
        %705 = vmatprep.subr.mxu0 0.0
        %706 = vmatpush1.msra.mxu0 0.0
        %707 = vmatprep.subr.mxu0 0.0
        %708 = vmatpush1.msra.mxu0 0.0
        %709 = vmatprep.subr.mxu0 0.0
        %710 = vmatpush1.msra.mxu0 0.0
        %711 = vmatprep.subr.mxu0 0.0
        %712 = vmatpush1.msra.mxu0 0.0
        %713 = vmatprep.subr.mxu0 0.0
        %714 = vmatpush1.msra.mxu0 0.0
        %715 = vmatprep.subr.mxu0 0.0
        %716 = vmatpush1.msra.mxu0 0.0
        %717 = vmatprep.subr.mxu0 0.0
        %718 = vmatpush1.msra.mxu0 0.0
        %719 = vmatprep.subr.mxu0 0.0
        %720 = vmatpush1.msra.mxu0 0.0
        %721 = vmatprep.subr.mxu0 0.0
        %722 = vmatpush1.msra.mxu0 0.0
        %723 = vmatprep.subr.mxu0 0.0
        %724 = vmatpush1.msra.mxu0 0.0
        %725 = vmatprep.subr.mxu0 0.0
        %726 = vmatpush1.msra.mxu0 0.0
        %727 = vmatprep.subr.mxu0 0.0
        %728 = vmatpush1.msra.mxu0 0.0
        %729 = vmatprep.subr.mxu0 0.0
        %730 = vmatpush1.msra.mxu0 0.0
        %731 = vmatprep.subr.mxu0 0.0
        %732 = vmatpush1.msra.mxu0 0.0
        %733 = vmatprep.subr.mxu0 0.0
        %734 = vmatpush1.msra.mxu0 0.0
        %735 = vmatprep.subr.mxu0 0.0
        %736 = vmatpush1.msra.mxu0 0.0
        %737 = vmatprep.subr.mxu0 0.0
        %738 = vmatpush1.msra.mxu0 0.0
        %739 = vmatprep.subr.mxu0 0.0
        %740 = vmatpush1.msra.mxu0 0.0
        %741 = vmatprep.subr.mxu0 0.0
        %742 = vmatpush1.msra.mxu0 0.0
        %743 = vmatprep.subr.mxu0 0.0
        %744 = vmatpush1.msra.mxu0 0.0
        %745 = vmatprep.subr.mxu0 0.0
        %746 = vmatpush1.msra.mxu0 0.0
        %747 = vmatprep.subr.mxu0 0.0
        %748 = vmatpush1.msra.mxu0 0.0
        %749 = vmatprep.subr.mxu0 0.0
        %750 = vmatpush1.msra.mxu0 0.0
        %751 = vmatprep.subr.mxu0 0.0
        %752 = vmatpush1.msra.mxu0 0.0
        %753 = vmatprep.subr.mxu0 0.0
        %754 = vmatpush1.msra.mxu0 0.0
        %755 = vmatprep.subr.mxu0 0.0
        %756 = vmatpush1.msra.mxu0 0.0
        %757 = vmatprep.subr.mxu0 0.0
        %758 = vmatpush1.msra.mxu0 0.0
        %759 = vmatprep.subr.mxu0 0.0
        %760 = vmatpush1.msra.mxu0 0.0
        %761 = vmatprep.subr.mxu0 0.0
        %762 = vmatpush1.msra.mxu0 0.0
        %763 = vmatprep.mubr.f32.mxu0 0.0
        %764 = vmatmul.mubr.f32.gmra.mrb[0].mxu0 %v693
        %v765 = vpop.f32.mrb[0].mxu0
        %v766 = vadd.f32 0.0, %v765
        %v767 = vpop.f32.mrb[0].mxu0
        %v768 = vadd.f32 0.0, %v767
        %769 = vdwg.mxu0
        %v770 = vadd.f32 %v679, %v766
        %v771 = vadd.f32 %v680, %v768
        %s772 = scalar_lea.vmem %s1, 56
        %v773 = vld [vmem:[%s772] sm:$0xff]
        %774 = vrot.lane.b32.xlu0 %v142, 95
        %v775 = vpop.permute.xlu0 %774
        %776 = vrot.lane.b32.xlu0 %v149, 95
        %v777 = vpop.permute.xlu0 %776
        %778 = vrot.lane.b32.xlu0 %v143, 95
        %v779 = vpop.permute.xlu0 %778
        %vm780 = vcmask 777216
        %v781 = vsel %vm780, %v775, %v777
        %v782 = vsel %vm780, %v777, %v779
        %v784 = vsel %vm159, %v773, 0
        %v786 = vsel %vm163, %v781, 0
        %v788 = vsel %vm163, %v782, 0
        %790 = vmatprep.subr.mxu0 %v788
        %791 = vmatpush1.msra.mxu0 %v786
        %792 = vmatprep.subr.mxu0 0.0
        %793 = vmatpush1.msra.mxu0 0.0
        %794 = vmatprep.subr.mxu0 0.0
        %795 = vmatpush1.msra.mxu0 0.0
        %796 = vmatprep.subr.mxu0 0.0
        %797 = vmatpush1.msra.mxu0 0.0
        %798 = vmatprep.subr.mxu0 0.0
        %799 = vmatpush1.msra.mxu0 0.0
        %800 = vmatprep.subr.mxu0 0.0
        %801 = vmatpush1.msra.mxu0 0.0
        %802 = vmatprep.subr.mxu0 0.0
        %803 = vmatpush1.msra.mxu0 0.0
        %804 = vmatprep.subr.mxu0 0.0
        %805 = vmatpush1.msra.mxu0 0.0
        %806 = vmatprep.subr.mxu0 0.0
        %807 = vmatpush1.msra.mxu0 0.0
        %808 = vmatprep.subr.mxu0 0.0
        %809 = vmatpush1.msra.mxu0 0.0
        %810 = vmatprep.subr.mxu0 0.0
        %811 = vmatpush1.msra.mxu0 0.0
        %812 = vmatprep.subr.mxu0 0.0
        %813 = vmatpush1.msra.mxu0 0.0
        %814 = vmatprep.subr.mxu0 0.0
        %815 = vmatpush1.msra.mxu0 0.0
        %816 = vmatprep.subr.mxu0 0.0
        %817 = vmatpush1.msra.mxu0 0.0
        %818 = vmatprep.subr.mxu0 0.0
        %819 = vmatpush1.msra.mxu0 0.0
        %820 = vmatprep.subr.mxu0 0.0
        %821 = vmatpush1.msra.mxu0 0.0
        %822 = vmatprep.subr.mxu0 0.0
        %823 = vmatpush1.msra.mxu0 0.0
        %824 = vmatprep.subr.mxu0 0.0
        %825 = vmatpush1.msra.mxu0 0.0
        %826 = vmatprep.subr.mxu0 0.0
        %827 = vmatpush1.msra.mxu0 0.0
        %828 = vmatprep.subr.mxu0 0.0
        %829 = vmatpush1.msra.mxu0 0.0
        %830 = vmatprep.subr.mxu0 0.0
        %831 = vmatpush1.msra.mxu0 0.0
        %832 = vmatprep.subr.mxu0 0.0
        %833 = vmatpush1.msra.mxu0 0.0
        %834 = vmatprep.subr.mxu0 0.0
        %835 = vmatpush1.msra.mxu0 0.0
        %836 = vmatprep.subr.mxu0 0.0
        %837 = vmatpush1.msra.mxu0 0.0
        %838 = vmatprep.subr.mxu0 0.0
        %839 = vmatpush1.msra.mxu0 0.0
        %840 = vmatprep.subr.mxu0 0.0
        %841 = vmatpush1.msra.mxu0 0.0
        %842 = vmatprep.subr.mxu0 0.0
        %843 = vmatpush1.msra.mxu0 0.0
        %844 = vmatprep.subr.mxu0 0.0
        %845 = vmatpush1.msra.mxu0 0.0
        %846 = vmatprep.subr.mxu0 0.0
        %847 = vmatpush1.msra.mxu0 0.0
        %848 = vmatprep.subr.mxu0 0.0
        %849 = vmatpush1.msra.mxu0 0.0
        %850 = vmatprep.subr.mxu0 0.0
        %851 = vmatpush1.msra.mxu0 0.0
        %852 = vmatprep.subr.mxu0 0.0
        %853 = vmatpush1.msra.mxu0 0.0
        %854 = vmatprep.mubr.f32.mxu0 0.0
        %855 = vmatmul.mubr.f32.gmra.mrb[0].mxu0 %v784
        %v856 = vpop.f32.mrb[0].mxu0
        %v857 = vadd.f32 0.0, %v856
        %v858 = vpop.f32.mrb[0].mxu0
        %v859 = vadd.f32 0.0, %v858
        %860 = vdwg.mxu0
        %v861 = vadd.f32 %v770, %v857
        %v862 = vadd.f32 %v771, %v859
        %s863 = scalar_lea.vmem %s1, 64
        %v864 = vld [vmem:[%s863] sm:$0xff]
        %865 = vrot.lane.b32.xlu0 %v142, 94
        %v866 = vpop.permute.xlu0 %865
        %867 = vrot.lane.b32.xlu0 %v149, 94
        %v868 = vpop.permute.xlu0 %867
        %869 = vrot.lane.b32.xlu0 %v143, 94
        %v870 = vpop.permute.xlu0 %869
        %vm871 = vcmask 769024
        %v872 = vsel %vm871, %v866, %v868
        %v873 = vsel %vm871, %v868, %v870
        %v875 = vsel %vm159, %v864, 0
        %v877 = vsel %vm163, %v872, 0
        %v879 = vsel %vm163, %v873, 0
        %881 = vmatprep.subr.mxu0 %v879
        %882 = vmatpush1.msra.mxu0 %v877
        %883 = vmatprep.subr.mxu0 0.0
        %884 = vmatpush1.msra.mxu0 0.0
        %885 = vmatprep.subr.mxu0 0.0
        %886 = vmatpush1.msra.mxu0 0.0
        %887 = vmatprep.subr.mxu0 0.0
        %888 = vmatpush1.msra.mxu0 0.0
        %889 = vmatprep.subr.mxu0 0.0
        %890 = vmatpush1.msra.mxu0 0.0
        %891 = vmatprep.subr.mxu0 0.0
        %892 = vmatpush1.msra.mxu0 0.0
        %893 = vmatprep.subr.mxu0 0.0
        %894 = vmatpush1.msra.mxu0 0.0
        %895 = vmatprep.subr.mxu0 0.0
        %896 = vmatpush1.msra.mxu0 0.0
        %897 = vmatprep.subr.mxu0 0.0
        %898 = vmatpush1.msra.mxu0 0.0
        %899 = vmatprep.subr.mxu0 0.0
        %900 = vmatpush1.msra.mxu0 0.0
        %901 = vmatprep.subr.mxu0 0.0
        %902 = vmatpush1.msra.mxu0 0.0
        %903 = vmatprep.subr.mxu0 0.0
        %904 = vmatpush1.msra.mxu0 0.0
        %905 = vmatprep.subr.mxu0 0.0
        %906 = vmatpush1.msra.mxu0 0.0
        %907 = vmatprep.subr.mxu0 0.0
        %908 = vmatpush1.msra.mxu0 0.0
        %909 = vmatprep.subr.mxu0 0.0
        %910 = vmatpush1.msra.mxu0 0.0
        %911 = vmatprep.subr.mxu0 0.0
        %912 = vmatpush1.msra.mxu0 0.0
        %913 = vmatprep.subr.mxu0 0.0
        %914 = vmatpush1.msra.mxu0 0.0
        %915 = vmatprep.subr.mxu0 0.0
        %916 = vmatpush1.msra.mxu0 0.0
        %917 = vmatprep.subr.mxu0 0.0
        %918 = vmatpush1.msra.mxu0 0.0
        %919 = vmatprep.subr.mxu0 0.0
        %920 = vmatpush1.msra.mxu0 0.0
        %921 = vmatprep.subr.mxu0 0.0
        %922 = vmatpush1.msra.mxu0 0.0
        %923 = vmatprep.subr.mxu0 0.0
        %924 = vmatpush1.msra.mxu0 0.0
        %925 = vmatprep.subr.mxu0 0.0
        %926 = vmatpush1.msra.mxu0 0.0
        %927 = vmatprep.subr.mxu0 0.0
        %928 = vmatpush1.msra.mxu0 0.0
        %929 = vmatprep.subr.mxu0 0.0
        %930 = vmatpush1.msra.mxu0 0.0
        %931 = vmatprep.subr.mxu0 0.0
        %932 = vmatpush1.msra.mxu0 0.0
        %933 = vmatprep.subr.mxu0 0.0
        %934 = vmatpush1.msra.mxu0 0.0
        %935 = vmatprep.subr.mxu0 0.0
        %936 = vmatpush1.msra.mxu0 0.0
        %937 = vmatprep.subr.mxu0 0.0
        %938 = vmatpush1.msra.mxu0 0.0
        %939 = vmatprep.subr.mxu0 0.0
        %940 = vmatpush1.msra.mxu0 0.0
        %941 = vmatprep.subr.mxu0 0.0
        %942 = vmatpush1.msra.mxu0 0.0
        %943 = vmatprep.subr.mxu0 0.0
        %944 = vmatpush1.msra.mxu0 0.0
        %945 = vmatprep.mubr.f32.mxu0 0.0
        %946 = vmatmul.mubr.f32.gmra.mrb[0].mxu0 %v875
        %v947 = vpop.f32.mrb[0].mxu0
        %v948 = vadd.f32 0.0, %v947
        %v949 = vpop.f32.mrb[0].mxu0
        %v950 = vadd.f32 0.0, %v949
        %951 = vdwg.mxu0
        %v952 = vadd.f32 %v861, %v948
        %v953 = vadd.f32 %v862, %v950
        %954 = vst [vmem:[%s136] sm:$0xff] %v952
        %955 = vst [vmem:[%s136 + $0x8] sm:$0xff] %v953
        %s956 = sand.u32 %s71, 1
        %s957 = scalar_lea.sflag [#allocation3], %s956
        %s958 = sand.u32 %s71, 1
        %s959 = smul.addr %s958, 16
        %s960 = scalar_lea.vmem [#allocation2], %s959
        // Predicated region
        $region29: #{tpu_custom_call.1} parent=27 // pred_check
          %p961 = pneg %p81
        $region30: #{tpu_custom_call.1} parent=27 // pred_check_branch
          %963 = sbr.rel (%p961) target = $region32
        $region31: #{tpu_custom_call.1} parent=27 // pred_region
          %s965 = ssub.s32 256, 256
          %966 = vsyncadd %s957, %s965
          %s967 = smul.addr %s16, 2
          %s968 = smul.addr %s967, 128
          %s969 = scalar_lea.hbm %s2, %s968
          %s971 = sshll.u32 %s960, 4
          %s972 = int_to_ptr.vmem [resolvable:$true] %s971
          %974 = dma.vmem_to_hbm [thread:$0]  %s972, 256, %s969, %s957
        $region32: #{tpu_custom_call.1} parent=27 // pred_fallthru
          _
      $region28: #{tpu_custom_call.1} parent=5 // pred_fallthru
        _
      %p975 = scmp.le.s32.totalorder 2, %s11
      // Predicated region
      $region33: #{tpu_custom_call.1} parent=5 // pred_check
        %p976 = pneg %p975
      $region34: #{tpu_custom_call.1} parent=5 // pred_check_branch
        %978 = sbr.rel (%p976) target = $region36
      $region35: #{tpu_custom_call.1} parent=5 // pred_region
        %s979 = ssub.s32 %s11, 2
        // Predicated region
        $region37: #{tpu_custom_call.1} parent=35 // pred_check
          %p980 = pneg %p87
        $region38: #{tpu_custom_call.1} parent=35 // pred_check_branch
          %982 = sbr.rel (%p980) target = $region40
        $region39: #{tpu_custom_call.1} parent=35 // pred_region
          %s983 = sand.u32 %s72, 1
          %s984 = scalar_lea.sflag [#allocation3], %s983
          %s985 = sand.u32 %s72, 1
          %s986 = smul.addr %s985, 16
          %s987 = scalar_lea.vmem [#allocation2], %s986
          %988 = dma.done %s984, 256
        $region40: #{tpu_custom_call.1} parent=35 // pred_fallthru
          _
      $region36: #{tpu_custom_call.1} parent=5 // pred_fallthru
        _
    $region6: #{tpu_custom_call.1} parent=1 // loop_footer
      %s15 = sadd.s32 1, %s11
    $region7: #{tpu_custom_call.1} parent=1 // loop_footer_branch
      %10 = sbr.rel target = $region3
    $region8: #{tpu_custom_call.1} parent=1 // loop_exit
      _
    %989 = vsyncpa [#allocation3], 1
    %s990 = scalar_lea.sflag [#allocation3], 1
    %991 = vsyncpa %s990, 1

</llo_original>
